<compile_context>
chip_gen: v5e
topology: v5e:2x2
jax: 0.10.0
libtpu: 0.0.40
codegen_flags: <defaults>
</compile_context>

<pallas_src>
import functools

import jax
import jax.numpy as jnp
from jax import lax
from jax.experimental import pallas as pl
from jax.experimental.pallas import tpu as pltpu


def init_vit_embeddings_params(key, channels, out_put_size, kernel_size):
    """Deterministic Conv2d(1, out_put_size, (k, k)) parameter init."""
    k_w, k_b = jax.random.split(key)
    fan_in = 1 * kernel_size * kernel_size
    bound = 1.0 / jnp.sqrt(fan_in)
    weight = jax.random.uniform(
        k_w, (out_put_size, 1, kernel_size, kernel_size),
        dtype=jnp.float32, minval=-bound, maxval=bound)
    bias = jax.random.uniform(
        k_b, (out_put_size,), dtype=jnp.float32, minval=-bound, maxval=bound)
    return weight, bias


def _vmem_budget_bytes():
    """Generation-aware per-call VMEM budget.

    Half of physical VMEM (v5e/v6e: 128 MiB -> 64 MiB, v7x: 64 MiB -> 32 MiB),
    never below the 16 MiB v5e scoped default.  Passed as vmem_limit_bytes so
    large tiles compile on every generation."""
    try:
        cap = int(pltpu.get_tpu_info().vmem_capacity_bytes)
    except Exception:
        cap = 64 * 1024 * 1024      # conservative fallback (fits v7x too)
    return int(max(16 * 1024 * 1024, min(cap // 2, 64 * 1024 * 1024)))


def _choose_row_tile(w_out, k_dim, h_out, tn, budget_bytes, in_itemsize,
                     out_itemsize=4, max_rows_cap=4096):
    """Largest W-row tile TW whose double-buffered x/out blocks plus the
    grid-resident weight and bias fit the VMEM budget.  TW is either the full
    W_out or a multiple of 8 (so the (8,128) block rule always holds); it does
    NOT have to divide W_out (the grid uses cdiv)."""
    headroom = 2 * 1024 * 1024
    fixed = 2 * (h_out * k_dim * tn * in_itemsize) + 2 * (tn * 4)   # weight + bias
    per_row = 2 * (k_dim * in_itemsize + h_out * tn * out_itemsize)  # x row + out rows
    avail = budget_bytes - headroom - fixed
    max_rows = max(8, avail // per_row)
    max_rows = min(max_rows, max_rows_cap)
    if w_out <= max_rows:
        return int(w_out)
    return int(max(8, (max_rows // 8) * 8))


def vit_embeddings_forward(x, weight, bias, *, channels, out_put_size,
                           kernel_size, max_pool=False,
                           compute_dtype=jnp.bfloat16):
    """Pallas implementation of ViTEmbeddings.forward (max_pool=False path)."""
    assert channels % kernel_size == 0, \
        "The number of channels must be divisible by the kernel size"
    # TODO(synk): max_pool=True branch (nn.MaxPool2d((2,2)) on the token grid)
    # is not implemented; the default max_pool=False path is nn.Identity().
    if max_pool:
        raise NotImplementedError("max_pool=True path not implemented")

    B, T, C = x.shape
    assert C == channels
    k = kernel_size
    O = out_put_size
    H_out = C // k                     # conv output height in both stride regimes

    # F.pad on the seq dim so that it is divisible by k (matches the module).
    if T % k != 0:
        total_padding = (k - T % k) % k
        pad_left = total_padding // 2
        pad_right = total_padding - pad_left
        x_pad = jnp.pad(x, ((0, 0), (pad_left, pad_right), (0, 0)))
    else:
        x_pad = x
    Tp = x_pad.shape[1]
    W_out = Tp // k

    # Pure-view im2col rows: (b, w) patches of one full time-step group.
    K = k * C
    P = x_pad.reshape(B, W_out, K).astype(compute_dtype)   # bf16 stream of x

    # Block-structured per-h weight: W_big[h, kt*C + c, o] = weight[o,0,c-h*k,kt]
    # for h*k <= c < (h+1)*k, else 0.  Tiny; built once at trace time.
    # TODO(synk): for very large C*k (MXU-bound regime) switch to an HBM-side
    # (kt<->h) regroup + dense (k*k, n_pad) weight to remove the H_out x
    # overcompute of this block-sparse contraction.
    w_t = jnp.transpose(weight[:, 0, :, :], (2, 1, 0))      # (kt, kc, O)
    eye_h = jnp.eye(H_out, dtype=weight.dtype)
    w_big = jnp.einsum('hg,tco->htgco', eye_h, w_t).reshape(H_out, K, O)
    w_big = w_big.astype(compute_dtype)

    # Lane-dense N: pad columns to a multiple of 128 (unmasked full-lane vst).
    n_pad = ((O + 127) // 128) * 128
    if n_pad != O:
        w_big = jnp.pad(w_big, ((0, 0), (0, 0), (0, n_pad - O)))
    bias_pad = jnp.pad(bias.astype(jnp.float32), (0, n_pad - O)).reshape(1, n_pad)

    # N tiling only when O is large (keeps TW big and MXU tiles well shaped).
    if n_pad <= 1024:
        TN = n_pad
    elif n_pad % 512 == 0:
        TN = 512
    elif n_pad % 256 == 0:
        TN = 256
    else:
        TN = 128
    num_nt = n_pad // TN

    budget = _vmem_budget_bytes()
    in_itemsize = jnp.dtype(compute_dtype).itemsize
    out_itemsize = jnp.dtype(x.dtype).itemsize
    TW = _choose_row_tile(W_out, K, H_out, TN, budget, in_itemsize, out_itemsize)
    num_wt = int(pl.cdiv(W_out, TW))

    def kernel(x_ref, w_ref, b_ref, o_ref):
        # x_ref: (TW, K) bf16 patch rows; w_ref: (H_out, K, TN) resident weight;
        # b_ref: (1, TN) f32 bias; o_ref: (H_out, TW, TN) output block.
        xb = x_ref[...]
        bvec = b_ref[...]
        for h in range(H_out):                       # static unroll, H_out small
            acc = jnp.dot(xb, w_ref[h], preferred_element_type=jnp.float32)
            o_ref[h] = (acc + bvec).astype(o_ref.dtype)

    cost = pl.CostEstimate(
        flops=2 * B * W_out * H_out * K * n_pad,
        transcendentals=0,
        bytes_accessed=(B * W_out * K * in_itemsize
                        + H_out * K * n_pad * in_itemsize
                        + B * H_out * W_out * n_pad * out_itemsize
                        + n_pad * 4))

    # Grid order (B, num_nt, num_wt): wt innermost -> x is streamed exactly once
    # when num_nt == 1, and the constant-index weight/bias blocks are fetched
    # once for the whole call.  All axes are independent -> fully "parallel".
    out4 = pl.pallas_call(
        kernel,
        out_shape=jax.ShapeDtypeStruct((B, H_out, W_out, n_pad), x.dtype),
        grid=(B, num_nt, num_wt),
        in_specs=[
            pl.BlockSpec((None, TW, K), lambda b, nt, wt: (b, wt, 0)),
            pl.BlockSpec((H_out, K, TN), lambda b, nt, wt: (0, 0, nt)),
            pl.BlockSpec((1, TN), lambda b, nt, wt: (0, nt)),
        ],
        out_specs=pl.BlockSpec((None, H_out, TW, TN),
                               lambda b, nt, wt: (b, 0, wt, nt)),
        compiler_params=pltpu.CompilerParams(
            dimension_semantics=("parallel", "parallel", "parallel"),
            vmem_limit_bytes=int(budget)),
        cost_estimate=cost,
    )(P, w_big, bias_pad)

    if n_pad != O:
        # NOTE: if the downstream consumer tolerates a lane-padded hidden dim,
        # skip this slice and keep the padded output (saves an HBM->HBM copy).
        out4 = out4[..., :O]
    # (B, H_out, W_out, O) -> (B, H_out*W_out, O): pure view, matches
    # permute(0,2,3,1).flatten(1,2) of the PyTorch conv output (h-major tokens).
    return out4.reshape(B, H_out * W_out, O)


def _reference_forward(x, weight, bias, *, channels, out_put_size, kernel_size):
    """Pure-JAX (lax.conv, f32) reference mirroring the PyTorch forward."""
    B, T, C = x.shape
    k = kernel_size
    vs = 1 if k == channels else k
    x_img = jnp.transpose(x, (0, 2, 1))[:, None, :, :]  # (B, 1, C, T)
    if T % k != 0:
        total_padding = (k - T % k) % k
        pad_left = total_padding // 2
        pad_right = total_padding - pad_left
    else:
        pad_left = pad_right = 0
    x_img = jnp.pad(x_img, ((0, 0), (0, 0), (0, 0), (pad_left, pad_right)))
    y = lax.conv_general_dilated(
        x_img, weight, window_strides=(vs, k), padding="VALID",
        dimension_numbers=("NCHW", "OIHW", "NCHW"))
    y = y + bias.reshape(1, out_put_size, 1, 1)
    y = jnp.transpose(y, (0, 2, 3, 1))               # (B, H, W, O)
    return y.reshape(B, -1, out_put_size)            # (B, H*W, O)


if __name__ == "__main__":
    key = jax.random.PRNGKey(0)

    # (B, T, channels, kernel_size, out_put_size)
    configs = [
        (2, 16, 8, 4, 32),    # k < channels  -> vertical_stride = k, H_out=2
        (2, 16, 8, 8, 32),    # k == channels -> vertical_stride = 1, H_out=1
        (2, 18, 8, 4, 32),    # seq not divisible by k -> padding path
        (2, 52, 16, 4, 48),   # H_out=4, W_out=13 (not a multiple of 8), O<128
    ]

    for (B, T, C, ksz, O) in configs:
        key, k_x, k_p = jax.random.split(key, 3)
        x = jax.random.normal(k_x, (B, T, C), dtype=jnp.float32)
        weight, bias = init_vit_embeddings_params(k_p, C, O, ksz)

        fwd = functools.partial(
            vit_embeddings_forward,
            channels=C, out_put_size=O, kernel_size=ksz, max_pool=False)

        out = jax.block_until_ready(jax.jit(fwd)(x, weight, bias))
        ref = _reference_forward(
            x, weight, bias, channels=C, out_put_size=O, kernel_size=ksz)

        assert out.shape == ref.shape, (out.shape, ref.shape)
        # bf16 operands (f32 accumulation) -> loosened tolerance vs f32 ref.
        assert jnp.allclose(out, ref, atol=2e-2, rtol=2e-2), \
            f"mismatch vs reference for config {(B, T, C, ksz, O)}"

    print("KERNEL_OK")
</pallas_src>

<mosaic_0001>
module attributes {stable_mosaic.version = 11 : i64} {
  func.func @kernel(%arg0: i32, %arg1: i32, %arg2: i32, %arg3: memref<1x4x32xbf16, #tpu.memory_space<vmem>>, %arg4: memref<2x32x128xbf16, #tpu.memory_space<vmem>>, %arg5: memref<1x128xf32, #tpu.memory_space<vmem>>, %arg6: memref<1x2x4x128xf32, #tpu.memory_space<vmem>>) attributes {dimension_semantics = [#tpu.dimension_semantics<parallel>, #tpu.dimension_semantics<parallel>, #tpu.dimension_semantics<parallel>], iteration_bounds = array<i64: 2, 1, 1>, scalar_prefetch = 0 : i64, scratch_operands = 0 : i64, tpu.core_type = #tpu.core_type<tc>, window_params = [{transform_indices = @transform_0, window_bounds = array<i64: 1, 4, 32>}, {transform_indices = @transform_1, window_bounds = array<i64: 2, 32, 128>}, {transform_indices = @transform_2, window_bounds = array<i64: 1, 128>}, {transform_indices = @transform_3, window_bounds = array<i64: 1, 2, 4, 128>}]} {
    %c0 = arith.constant 0 : index
    %c0_0 = arith.constant 0 : index
    %c0_1 = arith.constant 0 : index
    %0 = vector.load %arg3[%c0, %c0_0, %c0_1] : memref<1x4x32xbf16, #tpu.memory_space<vmem>>, vector<1x4x32xbf16>
    %1 = vector.shape_cast %0 : vector<1x4x32xbf16> to vector<4x32xbf16>
    %c0_2 = arith.constant 0 : index
    %c0_3 = arith.constant 0 : index
    %2 = vector.load %arg5[%c0_2, %c0_3] : memref<1x128xf32, #tpu.memory_space<vmem>>, vector<1x128xf32>
    %c0_4 = arith.constant 0 : index
    %c0_5 = arith.constant 0 : index
    %c0_6 = arith.constant 0 : index
    %3 = vector.load %arg4[%c0_4, %c0_5, %c0_6] : memref<2x32x128xbf16, #tpu.memory_space<vmem>>, vector<1x32x128xbf16>
    %4 = vector.shape_cast %3 : vector<1x32x128xbf16> to vector<32x128xbf16>
    %cst = arith.constant dense<0.000000e+00> : vector<4x128xf32>
    %5 = tpu.matmul %1, %4, %cst {dimension_numbers = #tpu.dot_dimension_numbers<[1], [0], [0], [1], [0, 0, 1, 1], [], []>} : vector<4x32xbf16>, vector<32x128xbf16>, vector<4x128xf32> -> vector<4x128xf32>
    %6 = vector.broadcast %2 : vector<1x128xf32> to vector<4x128xf32>
    %7 = arith.addf %5, %6 : vector<4x128xf32>
    %c0_7 = arith.constant 0 : index
    %c0_8 = arith.constant 0 : index
    %c0_9 = arith.constant 0 : index
    %c0_10 = arith.constant 0 : index
    %8 = vector.load %arg6[%c0_7, %c0_8, %c0_9, %c0_10] : memref<1x2x4x128xf32, #tpu.memory_space<vmem>>, vector<1x1x4x128xf32>
    %9 = vector.shape_cast %8 : vector<1x1x4x128xf32> to vector<4x128xf32>
    %10 = vector.shape_cast %7 : vector<4x128xf32> to vector<1x1x4x128xf32>
    tpu.vector_store %arg6[%c0_7, %c0_8, %c0_9, %c0_10], %10 {strides = array<i32>} : memref<1x2x4x128xf32, #tpu.memory_space<vmem>>, vector<1x1x4x128xf32>,
    %c1 = arith.constant 1 : index
    %c0_11 = arith.constant 0 : index
    %c0_12 = arith.constant 0 : index
    %11 = vector.load %arg4[%c1, %c0_11, %c0_12] : memref<2x32x128xbf16, #tpu.memory_space<vmem>>, vector<1x32x128xbf16>
    %12 = vector.shape_cast %11 : vector<1x32x128xbf16> to vector<32x128xbf16>
    %cst_13 = arith.constant dense<0.000000e+00> : vector<4x128xf32>
    %13 = tpu.matmul %1, %12, %cst_13 {dimension_numbers = #tpu.dot_dimension_numbers<[1], [0], [0], [1], [0, 0, 1, 1], [], []>} : vector<4x32xbf16>, vector<32x128xbf16>, vector<4x128xf32> -> vector<4x128xf32>
    %14 = vector.broadcast %2 : vector<1x128xf32> to vector<4x128xf32>
    %15 = arith.addf %13, %14 : vector<4x128xf32>
    %c0_14 = arith.constant 0 : index
    %c1_15 = arith.constant 1 : index
    %c0_16 = arith.constant 0 : index
    %c0_17 = arith.constant 0 : index
    %16 = vector.load %arg6[%c0_14, %c1_15, %c0_16, %c0_17] : memref<1x2x4x128xf32, #tpu.memory_space<vmem>>, vector<1x1x4x128xf32>
    %17 = vector.shape_cast %16 : vector<1x1x4x128xf32> to vector<4x128xf32>
    %18 = vector.shape_cast %15 : vector<4x128xf32> to vector<1x1x4x128xf32>
    tpu.vector_store %arg6[%c0_14, %c1_15, %c0_16, %c0_17], %18 {strides = array<i32>} : memref<1x2x4x128xf32, #tpu.memory_space<vmem>>, vector<1x1x4x128xf32>,
    return
  }
  func.func @transform_0(%arg0: i32, %arg1: i32, %arg2: i32) -> (i32, i32, i32) {
    %c0_i32 = arith.constant 0 : i32
    %c0_i32_0 = arith.constant 0 : i32
    return %arg0, %arg2, %c0_i32 : i32, i32, i32
  }
  func.func @transform_1(%arg0: i32, %arg1: i32, %arg2: i32) -> (i32, i32, i32) {
    %c0_i32 = arith.constant 0 : i32
    %c0_i32_0 = arith.constant 0 : i32
    %c0_i32_1 = arith.constant 0 : i32
    return %c0_i32, %c0_i32_0, %arg1 : i32, i32, i32
  }
  func.func @transform_2(%arg0: i32, %arg1: i32, %arg2: i32) -> (i32, i32) {
    %c0_i32 = arith.constant 0 : i32
    %c0_i32_0 = arith.constant 0 : i32
    return %c0_i32, %arg1 : i32, i32
  }
  func.func @transform_3(%arg0: i32, %arg1: i32, %arg2: i32) -> (i32, i32, i32, i32) {
    %c0_i32 = arith.constant 0 : i32
    %c0_i32_0 = arith.constant 0 : i32
    return %arg0, %c0_i32, %arg2, %arg1 : i32, i32, i32, i32
  }
}

</mosaic_0001>

<llo_original>
// kernel: vit_embeddings_forward.1
$region0: #{vit_embeddings_forward.1}
  #allocation0 [shape = 'u32[]', space=smem, size = 0x4, offset = 0x4, fixed_abs, tag = 'smem constant byte address 0x4 - core index']
  #allocation1 [shape = 'u32[72,128]{1,0:T(1,128)}', space=vmem, size = 0x9000, scoped, tag = 'internal scratch']
  %s0 = inlined_call_operand.vmem [shape: bf16[2,4,32], index: 0, kind: input, shape index: {}]
  %s1 = inlined_call_operand.vmem [shape: bf16[2,32,128], index: 1, kind: input, shape index: {}]
  %s2 = inlined_call_operand.vmem [shape: f32[1,128], index: 2, kind: input, shape index: {}]
  %s3 = inlined_call_operand.hbm [shape: f32[2,2,4,128], index: 3, kind: output, shape index: {}]
  %s4 = sld [smem:[#allocation0]]
  $region45: #{vit_embeddings_forward.1} parent=0
    _
  %s6 = ssub.s32 1, %s4
  %s7 = scalar_select 0, %s6, %s4
  $region1: #{vit_embeddings_forward.1} parent=0
    #allocation2 [shape = 'u8[8192]{0}', space=vmem, size = 0x2000, scoped, tag = 'output window, operand 0']
    #allocation3 [shape = 's32[2]{0}', space=sflag, size = 0x8, scoped, tag = 'scoped memory for vit_embeddings_forward.1']
    %8 = vsyncpa [#allocation3], 0
    %s9 = scalar_lea.sflag [#allocation3], 1
    %10 = vsyncpa %s9, 0
    loop: start=0, step=1, limit=4
    $region2: #{vit_embeddings_forward.1} parent=1 // loop_pre_header
      _
    $region3: #{vit_embeddings_forward.1} parent=1 // loop_header
      %s12 = sphi 0, %s16
      %p13 = scmp.ge.s32.totalorder %s12, 4
      %s19 = sphi 0, %s38
      %s20 = sphi 0, %s34
      %s21 = sphi 0, %s30
      %s22 = sphi 0, %s19
      %s23 = sphi 0, %s20
      %s24 = sphi 0, %s21
      %s25 = sphi 0, %s22
      %s26 = sphi 0, %s23
      %s27 = sphi 0, %s24
      %s43 = sphi 0, %s45
      %s46 = sphi 0, %s43
      %s47 = sphi 0, %s46
      %s63 = sphi 0, %s47
      %s69 = sphi 0, %s71
      %s72 = sphi 0, %s69
      %s73 = sphi 0, %s72
      %s89 = sphi 0, %s73
      %s95 = sphi 0, %s97
      %s98 = sphi 0, %s95
      %s99 = sphi 0, %s98
      %s115 = sphi 0, %s99
      %s125 = sphi 0, %s127
      %s128 = sphi 0, %s125
      %s129 = sphi 0, %s128
      %s145 = sphi 0, %s129
    $region4: #{vit_embeddings_forward.1} parent=1 // loop_header_branch
      %15 = sbr.rel (%p13) target = $region8
    $region5: #{vit_embeddings_forward.1} parent=1 // loop_body
      %s17 = ssub.s32 %s12, 1
      %s18 = ssub.s32 %s12, 2
      %s28 = sadd.s32 1, %s21
      %p29 = scmp.ge.s32.totalorder %s28, 1
      %s30 = scalar_select %p29, 0, %s28
      %s31 = sadd.s32 1, %s20
      %s32 = scalar_select %p29, %s31, %s20
      %p33 = scmp.ge.s32.totalorder %s32, 1
      %s34 = scalar_select %p33, 0, %s32
      %s35 = sadd.s32 1, %s19
      %s36 = scalar_select %p33, %s35, %s19
      %p37 = scmp.ge.s32.totalorder %s36, 2
      %s38 = scalar_select %p37, 0, %s36
      %s39 = ssub.s32 %s19, %s38
      %s40 = ssub.s32 %s21, %s30
      %s41 = sor.u32 %s39, %s40
      %p42 = scmp.eq.s32.totalorder %s41, 0
      %s44 = sadd.s32 %s43, 1
      %s45 = scalar_select %p42, %s43, %s44
      %p48 = pneg %p42
      %p49 = scmp.eq.s32.totalorder %s12, 1
      %p50 = por %p48, %p49
      %p51 = scmp.ne.s32.totalorder %s43, %s46
      %p52 = scmp.eq.s32.totalorder %s12, 0
      %p53 = por %p51, %p52
      %p54 = scmp.ne.s32.totalorder %s43, %s46
      %p55 = scmp.eq.s32.totalorder %s17, 1
      %p56 = por %p54, %p55
      %p57 = scmp.ne.s32.totalorder %s46, %s47
      %p58 = scmp.eq.s32.totalorder %s17, 0
      %p59 = por %p57, %p58
      %p60 = scmp.ne.s32.totalorder %s46, %s47
      %p61 = scmp.eq.s32.totalorder %s18, 1
      %p62 = por %p60, %p61
      %p64 = scmp.ne.s32.totalorder %s47, %s63
      %p65 = scmp.eq.s32.totalorder %s18, 0
      %p66 = por %p64, %p65
      %s67 = ssub.s32 %s20, %s34
      %p68 = scmp.eq.s32.totalorder %s67, 0
      %s70 = sadd.s32 %s69, 1
      %s71 = scalar_select %p68, %s69, %s70
      %p74 = pneg %p68
      %p75 = scmp.eq.s32.totalorder %s12, 1
      %p76 = por %p74, %p75
      %p77 = scmp.ne.s32.totalorder %s69, %s72
      %p78 = scmp.eq.s32.totalorder %s12, 0
      %p79 = por %p77, %p78
      %p80 = scmp.ne.s32.totalorder %s69, %s72
      %p81 = scmp.eq.s32.totalorder %s17, 1
      %p82 = por %p80, %p81
      %p83 = scmp.ne.s32.totalorder %s72, %s73
      %p84 = scmp.eq.s32.totalorder %s17, 0
      %p85 = por %p83, %p84
      %p86 = scmp.ne.s32.totalorder %s72, %s73
      %p87 = scmp.eq.s32.totalorder %s18, 1
      %p88 = por %p86, %p87
      %p90 = scmp.ne.s32.totalorder %s73, %s89
      %p91 = scmp.eq.s32.totalorder %s18, 0
      %p92 = por %p90, %p91
      %s93 = ssub.s32 %s20, %s34
      %p94 = scmp.eq.s32.totalorder %s93, 0
      %s96 = sadd.s32 %s95, 1
      %s97 = scalar_select %p94, %s95, %s96
      %p100 = pneg %p94
      %p101 = scmp.eq.s32.totalorder %s12, 1
      %p102 = por %p100, %p101
      %p103 = scmp.ne.s32.totalorder %s95, %s98
      %p104 = scmp.eq.s32.totalorder %s12, 0
      %p105 = por %p103, %p104
      %p106 = scmp.ne.s32.totalorder %s95, %s98
      %p107 = scmp.eq.s32.totalorder %s17, 1
      %p108 = por %p106, %p107
      %p109 = scmp.ne.s32.totalorder %s98, %s99
      %p110 = scmp.eq.s32.totalorder %s17, 0
      %p111 = por %p109, %p110
      %p112 = scmp.ne.s32.totalorder %s98, %s99
      %p113 = scmp.eq.s32.totalorder %s18, 1
      %p114 = por %p112, %p113
      %p116 = scmp.ne.s32.totalorder %s99, %s115
      %p117 = scmp.eq.s32.totalorder %s18, 0
      %p118 = por %p116, %p117
      %s119 = ssub.s32 %s19, %s38
      %s120 = ssub.s32 %s21, %s30
      %s121 = sor.u32 %s119, %s120
      %s122 = ssub.s32 %s20, %s34
      %s123 = sor.u32 %s121, %s122
      %p124 = scmp.eq.s32.totalorder %s123, 0
      %s126 = sadd.s32 %s125, 1
      %s127 = scalar_select %p124, %s125, %s126
      %p130 = pneg %p124
      %p131 = scmp.eq.s32.totalorder %s12, 1
      %p132 = por %p130, %p131
      %p133 = scmp.ne.s32.totalorder %s125, %s128
      %p134 = scmp.eq.s32.totalorder %s12, 0
      %p135 = por %p133, %p134
      %p136 = scmp.ne.s32.totalorder %s125, %s128
      %p137 = scmp.eq.s32.totalorder %s17, 1
      %p138 = por %p136, %p137
      %p139 = scmp.ne.s32.totalorder %s128, %s129
      %p140 = scmp.eq.s32.totalorder %s17, 0
      %p141 = por %p139, %p140
      %p142 = scmp.ne.s32.totalorder %s128, %s129
      %p143 = scmp.eq.s32.totalorder %s18, 1
      %p144 = por %p142, %p143
      %p146 = scmp.ne.s32.totalorder %s129, %s145
      %p147 = scmp.eq.s32.totalorder %s18, 0
      %p148 = por %p146, %p147
      %p149 = scmp.le.s32.totalorder 1, %s12
      %p150 = scmp.lt.s32.totalorder %s12, 3
      %p151 = pnand %p149, %p150
      %p152 = pneg %p151
      // Predicated region
      $region9: #{vit_embeddings_forward.1} parent=5 // pred_check
        _
      $region10: #{vit_embeddings_forward.1} parent=5 // pred_check_branch
        %154 = sbr.rel (%p151) target = $region12
      $region11: #{vit_embeddings_forward.1} parent=5 // pred_region
        %s155 = ssub.s32 %s12, 1
        // Predicated region
        $region13: #{vit_embeddings_forward.1} parent=11 // pred_check
          %p156 = pneg %p85
        $region14: #{vit_embeddings_forward.1} parent=11 // pred_check_branch
          %158 = sbr.rel (%p156) target = $region16
        $region15: #{vit_embeddings_forward.1} parent=11 // pred_region
          %p159 = scmp.lt.s32.totalorder %s23, 0
          %s160 = scalar_select %p159, %s23, 0
          %s161 = smul.addr %s160, 4
          %s162 = scalar_lea.vmem %s1, %s161
        $region16: #{vit_embeddings_forward.1} parent=11 // pred_fallthru
          _
        // Predicated region
        $region17: #{vit_embeddings_forward.1} parent=11 // pred_check
          %p163 = pneg %p111
        $region18: #{vit_embeddings_forward.1} parent=11 // pred_check_branch
          %165 = sbr.rel (%p163) target = $region20
        $region19: #{vit_embeddings_forward.1} parent=11 // pred_region
          %p166 = scmp.lt.s32.totalorder %s23, 0
          %s167 = scalar_select %p166, %s23, 0
          %s168 = scalar_lea.vmem %s2, %s167
        $region20: #{vit_embeddings_forward.1} parent=11 // pred_fallthru
          _
      $region12: #{vit_embeddings_forward.1} parent=5 // pred_fallthru
        _
      %p169 = scmp.lt.s32.totalorder %s12, 2
      // Predicated region
      $region21: #{vit_embeddings_forward.1} parent=5 // pred_check
        %p170 = pneg %p169
      $region22: #{vit_embeddings_forward.1} parent=5 // pred_check_branch
        %172 = sbr.rel (%p170) target = $region24
      $region23: #{vit_embeddings_forward.1} parent=5 // pred_region
        // Predicated region
        $region25: #{vit_embeddings_forward.1} parent=23 // pred_check
          %p173 = pneg %p53
        $region26: #{vit_embeddings_forward.1} parent=23 // pred_check_branch
          %175 = sbr.rel (%p173) target = $region28
        $region27: #{vit_embeddings_forward.1} parent=23 // pred_region
          %p176 = scmp.lt.s32.totalorder %s19, 1
          %s177 = scalar_select %p176, %s19, 1
          %p178 = scmp.lt.s32.totalorder %s21, 0
          %s179 = scalar_select %p178, %s21, 0
          %s180 = sadd.s32 %s179, %s177
          %s181 = smul.addr %s180, 2
          %s182 = scalar_lea.vmem %s0, %s181
        $region28: #{vit_embeddings_forward.1} parent=23 // pred_fallthru
          _
      $region24: #{vit_embeddings_forward.1} parent=5 // pred_fallthru
        _
      %p183 = scmp.le.s32.totalorder 1, %s12
      %p184 = scmp.lt.s32.totalorder %s12, 3
      %p185 = pnand %p183, %p184
      %p186 = pneg %p185
      // Predicated region
      $region29: #{vit_embeddings_forward.1} parent=5 // pred_check
        _
      $region30: #{vit_embeddings_forward.1} parent=5 // pred_check_branch
        %188 = sbr.rel (%p185) target = $region32
      $region31: #{vit_embeddings_forward.1} parent=5 // pred_region
        %s189 = ssub.s32 %s12, 1
        %p190 = scmp.lt.s32.totalorder %s22, 1
        %s191 = scalar_select %p190, %s22, 1
        %p192 = scmp.lt.s32.totalorder %s24, 0
        %s193 = scalar_select %p192, %s24, 0
        %s194 = sadd.s32 %s193, %s191
        %s195 = smul.addr %s194, 2
        %s196 = scalar_lea.vmem %s0, %s195
        %p197 = pneg %p59
        %p198 = pneg %p56
        %p199 = scmp.lt.s32.totalorder %s23, 0
        %s200 = scalar_select %p199, %s23, 0
        %s201 = smul.addr %s200, 4
        %s202 = scalar_lea.vmem %s1, %s201
        %p203 = pneg %p85
        %p204 = pneg %p82
        %p205 = scmp.lt.s32.totalorder %s23, 0
        %s206 = scalar_select %p205, %s23, 0
        %s207 = scalar_lea.vmem %s2, %s206
        %p208 = pneg %p111
        %p209 = pneg %p108
        %p210 = pneg %p141
        %p211 = pneg %p138
        %s212 = sand.u32 %s128, 1
        %s213 = scalar_lea.sflag [#allocation3], %s212
        %s214 = sand.u32 %s128, 1
        %s215 = smul.addr %s214, 8
        %s216 = scalar_lea.vmem [#allocation2], %s215
        %p217 = scmp.lt.s32.totalorder %s22, 1
        %s218 = scalar_select %p217, %s22, 1
        %p219 = scmp.lt.s32.totalorder %s24, 0
        %s220 = scalar_select %p219, %s24, 0
        %s221 = sadd.s32 %s220, %s218
        %s222 = smul.addr %s221, 2
        %s223 = scalar_lea.vmem %s0, %s222
        %p224 = scmp.lt.s32.totalorder %s23, 0
        %s225 = scalar_select %p224, %s23, 0
        %s226 = smul.addr %s225, 4
        %s227 = scalar_lea.vmem %s1, %s226
        %p228 = scmp.lt.s32.totalorder %s23, 0
        %s229 = scalar_select %p228, %s23, 0
        %s230 = scalar_lea.vmem %s2, %s229
        %v232 = vld [vmem:[%s223] sm:$0x3]
        %v233 = vld [vmem:[%s230] sm:$0x1]
        %v234 = vld [vmem:[%s227] sm:$0xf]
        %v235 = vld [vmem:[%s227 + $0x4] sm:$0xf]
        %v236 = vld [vmem:[%s227 + $0x8] sm:$0xf]
        %v237 = vld [vmem:[%s227 + $0xc] sm:$0xf]
        %v239 = vperm.slane %v233, 0
        %v245 = vunpack.c.l.b16 %v234
        %v246 = vunpack.c.l.b16 %v235
        %v247 = vunpack.c.l.b16 %v236
        %v248 = vunpack.c.l.b16 %v237
        %v249 = vpack.c.b16 %v246, %v245
        %v250 = vpack.c.b16 %v248, %v247
        %vm253 = vcmask 261120
        %v255 = vsel %vm253, %v232, 0
        %257 = vmatpush.bf16.msra.mxu0 0
        %258 = vmatpush.bf16.msra.mxu0 0
        %259 = vmatpush.bf16.msra.mxu0 0
        %260 = vmatpush.bf16.msra.mxu0 0
        %261 = vmatpush.bf16.msra.mxu0 0
        %262 = vmatpush.bf16.msra.mxu0 0
        %263 = vmatpush.bf16.msra.mxu0 %v250
        %264 = vmatpush.bf16.msra.mxu0 %v249
        %265 = vmatmul.bf16.gmra.mxu0 %v255
        %v266 = vpop.f32.mrf.mxu0
        %v267 = vadd.f32 %v239, %v266
        %v268 = vpop.f32.mrf.mxu0
        %269 = vdwg.mxu0
        %270 = vst [vmem:[%s216] sm:$0xf] %v267
        %s271 = scalar_lea.vmem %s227, 16
        %v272 = vld [vmem:[%s271] sm:$0xf]
        %v273 = vld [vmem:[%s271 + $0x4] sm:$0xf]
        %v274 = vld [vmem:[%s271 + $0x8] sm:$0xf]
        %v275 = vld [vmem:[%s271 + $0xc] sm:$0xf]
        %v280 = vunpack.c.l.b16 %v272
        %v281 = vunpack.c.l.b16 %v273
        %v282 = vunpack.c.l.b16 %v274
        %v283 = vunpack.c.l.b16 %v275
        %v284 = vpack.c.b16 %v281, %v280
        %v285 = vpack.c.b16 %v283, %v282
        %288 = vmatpush.bf16.msra.mxu0 0
        %289 = vmatpush.bf16.msra.mxu0 0
        %290 = vmatpush.bf16.msra.mxu0 0
        %291 = vmatpush.bf16.msra.mxu0 0
        %292 = vmatpush.bf16.msra.mxu0 0
        %293 = vmatpush.bf16.msra.mxu0 0
        %294 = vmatpush.bf16.msra.mxu0 %v285
        %295 = vmatpush.bf16.msra.mxu0 %v284
        %296 = vmatmul.bf16.gmra.mxu0 %v255
        %v297 = vpop.f32.mrf.mxu0
        %v298 = vadd.f32 %v239, %v297
        %v299 = vpop.f32.mrf.mxu0
        %300 = vdwg.mxu0
        %s301 = scalar_lea.vmem %s216, 4 [#allocation2]
        %302 = vst [vmem:[%s301] sm:$0xf] %v298
        %s303 = sand.u32 %s128, 1
        %s304 = scalar_lea.sflag [#allocation3], %s303
        %s305 = sand.u32 %s128, 1
        %s306 = smul.addr %s305, 8
        %s307 = scalar_lea.vmem [#allocation2], %s306
        // Predicated region
        $region33: #{vit_embeddings_forward.1} parent=31 // pred_check
          %p308 = pneg %p138
        $region34: #{vit_embeddings_forward.1} parent=31 // pred_check_branch
          %310 = sbr.rel (%p308) target = $region36
        $region35: #{vit_embeddings_forward.1} parent=31 // pred_region
          %312 = vsyncadd %s304, 0
          %s313 = sadd.s32 %s23, %s24
          %s314 = smul.addr %s22, 2
          %s315 = sadd.s32 %s313, %s314
          %s316 = smul.addr %s315, 4
          %s317 = scalar_lea.hbm %s3, %s316
          %s318 = sshll.u32 %s307, 4
          %s319 = int_to_ptr.vmem [resolvable:$true] %s318
          %s320 = sshll.u32 %s317, 4
          %s321 = int_to_ptr.hbm [resolvable:$true] %s320
          %326 = dma.vmem_to_hbm [thread:$0]  %s319, 128, %s321, %s304, 64, 64, 4
        $region36: #{vit_embeddings_forward.1} parent=31 // pred_fallthru
          _
      $region32: #{vit_embeddings_forward.1} parent=5 // pred_fallthru
        _
      %p327 = scmp.le.s32.totalorder 2, %s12
      // Predicated region
      $region37: #{vit_embeddings_forward.1} parent=5 // pred_check
        %p328 = pneg %p327
      $region38: #{vit_embeddings_forward.1} parent=5 // pred_check_branch
        %330 = sbr.rel (%p328) target = $region40
      $region39: #{vit_embeddings_forward.1} parent=5 // pred_region
        %s331 = ssub.s32 %s12, 2
        // Predicated region
        $region41: #{vit_embeddings_forward.1} parent=39 // pred_check
          %p332 = pneg %p144
        $region42: #{vit_embeddings_forward.1} parent=39 // pred_check_branch
          %334 = sbr.rel (%p332) target = $region44
        $region43: #{vit_embeddings_forward.1} parent=39 // pred_region
          %s335 = sand.u32 %s129, 1
          %s336 = scalar_lea.sflag [#allocation3], %s335
          %s337 = sand.u32 %s129, 1
          %s338 = smul.addr %s337, 8
          %s339 = scalar_lea.vmem [#allocation2], %s338
          %341 = dma.done %s336, 128
        $region44: #{vit_embeddings_forward.1} parent=39 // pred_fallthru
          _
      $region40: #{vit_embeddings_forward.1} parent=5 // pred_fallthru
        _
    $region6: #{vit_embeddings_forward.1} parent=1 // loop_footer
      %s16 = sadd.s32 1, %s12
    $region7: #{vit_embeddings_forward.1} parent=1 // loop_footer_branch
      %11 = sbr.rel target = $region3
    $region8: #{vit_embeddings_forward.1} parent=1 // loop_exit
      _
    %342 = vsyncpa [#allocation3], 1
    %s343 = scalar_lea.sflag [#allocation3], 1
    %344 = vsyncpa %s343, 1

</llo_original>
